<compile_context>
chip_gen: v7x
topology: tpu7x:2x2x1
jax: 0.10.0
libtpu: 0.0.40
codegen_flags: <defaults>
</compile_context>

<pallas_src>
import jax
import jax.numpy as jnp
import numpy as np
from jax import lax
from jax.experimental import pallas as pl
from jax.experimental.pallas import tpu as pltpu

FEAT = 768
NTYPE_TO_FUSE = ["ent", "event", "center"]
CENTERS_PER_BLOCK = 8            # full sublane occupancy of accumulator/output


def _round_up(x, m):
    return (x + m - 1) // m * m


# ---------------------------------------------------------------------------
# Kernel 1: event2center mean aggregation (sparse CSR gather):
#   center_x[c, :] = mean_{e in N(c)} event_x[e, :]
# 8 centers per grid step; CSR (indptr, sorted src, sorted dst) is
# scalar-prefetched into SMEM; event rows are DMA-gathered from HBM with a
# 2-deep double buffer and scatter-added (scaled by 1/deg) into an (8, 768)
# f32 accumulator.  Work scales with the number of edges only.
# ---------------------------------------------------------------------------
def _seg_mean_kernel(indptr_ref, indices_ref, dst_ref, ev_hbm, o_ref, buf, sem, acc):
    cb = acc.shape[0]
    c_base = pl.program_id(0) * cb
    start = indptr_ref[c_base]
    n_edges = indptr_ref[c_base + cb] - start

    def fetch(j, slot):
        e = indices_ref[start + j]
        pltpu.make_async_copy(ev_hbm.at[pl.ds(e, 1)], buf.at[slot], sem.at[slot]).start()

    # Prime slot 0 before zeroing the accumulator so the first DMA overlaps it.
    @pl.when(n_edges > 0)
    def _():
        fetch(0, 0)

    acc[...] = jnp.zeros_like(acc)
    row_sel = lax.broadcasted_iota(jnp.int32, (cb, 1), 0)   # hoisted out of the loop

    @pl.loop(0, n_edges)
    def _(j):
        slot = j & 1
        # SMEM reads + next-edge prefetch are issued BEFORE the wait (waits break
        # sst->sld forwarding; the prefetch hides the next row's DMA latency).
        dc = dst_ref[start + j]                       # destination center (global id)
        local = dc - c_base                           # row within this 8-center block
        deg = (indptr_ref[dc + 1] - indptr_ref[dc]).astype(jnp.float32)

        @pl.when(j + 1 < n_edges)
        def _():
            fetch(j + 1, 1 - slot)

        pltpu.make_async_copy(ev_hbm.at[pl.ds(0, 1)], buf.at[slot], sem.at[slot]).wait()
        row = buf[slot].astype(jnp.float32) * (1.0 / deg)          # (1, FEAT)
        acc[...] += jnp.where(row_sel == local, row, 0.0)          # scatter-add

    # Zero in-degree centers (and pad rows) stay 0, matching DGL mean.
    o_ref[...] = acc[...].astype(o_ref.dtype)


def event2center_mean(event_x, src, dst, n_center, *, cb=CENTERS_PER_BLOCK):
    """center_x[c] = mean_{(e -> c)} event_x[e]; 0 for centers with no in-edges."""
    src = src.astype(jnp.int32)
    dst = dst.astype(jnp.int32)
    order = jnp.argsort(dst)
    indices = src[order]                  # event row per edge, grouped by center
    dst_sorted = dst[order]
    n_blocks = pl.cdiv(n_center, cb)
    indptr = jnp.searchsorted(
        dst_sorted, jnp.arange(n_blocks * cb + 1, dtype=jnp.int32)
    ).astype(jnp.int32)
    # TODO(synk): for very large edge counts, tile indices/dst_sorted instead of
    # holding the full edge list in SMEM (1-D arrays pad to next_pow2(4E) bytes).

    return pl.pallas_call(
        _seg_mean_kernel,
        out_shape=jax.ShapeDtypeStruct((n_center, FEAT), event_x.dtype),
        grid_spec=pltpu.PrefetchScalarGridSpec(
            num_scalar_prefetch=3,
            grid=(n_blocks,),
            in_specs=[pl.BlockSpec(memory_space=pl.ANY)],   # event_x stays in HBM
            out_specs=pl.BlockSpec(
                (cb, FEAT), lambda b, indptr, indices, dsts: (b, 0)
            ),
            scratch_shapes=[
                pltpu.VMEM((2, 1, FEAT), event_x.dtype),    # double-buffered landing
                pltpu.SemaphoreType.DMA((2,)),
                pltpu.VMEM((cb, FEAT), jnp.float32),        # f32 accumulator
            ],
        ),
        compiler_params=pltpu.CompilerParams(dimension_semantics=("parallel",)),
    )(indptr, indices, dst_sorted, event_x)


# ---------------------------------------------------------------------------
# Kernel 2: fused "concat + Linear" for ALL 3 ntypes of a layer in one call:
#   y[t] = cat([f[t], h[t]], -1) @ W[t].T + b[t] = f[t] @ Wf[t] + h[t] @ Wh[t] + b[t]
# Grid = (ntype, row tiles); weights/bias are indexed by the ntype axis and
# stay VMEM-resident across row tiles (single-buffered when supported).
# Activations arrive as f32 and are cast to bf16 in-register (MXU inputs),
# f32 accumulation via preferred_element_type, f32 output.
# ---------------------------------------------------------------------------
def _fuse_kernel(f_ref, h_ref, wf_ref, wh_ref, b_ref, o_ref):
    f16 = f_ref[...].astype(jnp.bfloat16)     # in-kernel cast: VPU filler under MXU
    h16 = h_ref[...].astype(jnp.bfloat16)
    acc = jnp.dot(f16, wf_ref[...], preferred_element_type=jnp.float32)
    acc = acc + jnp.dot(h16, wh_ref[...], preferred_element_type=jnp.float32)
    o_ref[...] = (acc + b_ref[...]).astype(o_ref.dtype)


def _fuse_call(f, h, wf, wh, b, tm, single_buffer_weights):
    g, n, _ = h.shape
    tm = min(tm, n)
    grid = (g, pl.cdiv(n, tm))                 # ragged last row tile is masked

    def resident(shape, imap):
        if single_buffer_weights:
            return pl.BlockSpec(shape, imap, pipeline_mode=pl.Buffered(1))
        return pl.BlockSpec(shape, imap)

    return pl.pallas_call(
        _fuse_kernel,
        out_shape=jax.ShapeDtypeStruct((g, n, FEAT), jnp.float32),
        grid_spec=pltpu.PrefetchScalarGridSpec(
            num_scalar_prefetch=0,
            grid=grid,
            in_specs=[
                pl.BlockSpec((None, tm, FEAT), lambda t, i: (t, i, 0)),   # f rows (f32)
                pl.BlockSpec((None, tm, FEAT), lambda t, i: (t, i, 0)),   # h rows (f32)
                resident((None, FEAT, FEAT), lambda t, i: (t, 0, 0)),     # Wf[t] bf16
                resident((None, FEAT, FEAT), lambda t, i: (t, 0, 0)),     # Wh[t] bf16
                resident((None, 1, FEAT), lambda t, i: (t, 0, 0)),        # bias[t]
            ],
            out_specs=pl.BlockSpec((None, tm, FEAT), lambda t, i: (t, i, 0)),
        ),
        compiler_params=pltpu.CompilerParams(
            dimension_semantics=("parallel", "parallel")
        ),
    )(f, h, wf, wh, b)


def fuse_linear_stacked(f, h, wf, wh, b, *, tm=512):
    """f, h: (3, n_rows, 768) f32; wf, wh: (3, 768, 768) bf16 (pre-transposed);
    b: (3, 1, 768) f32.  Returns (3, n_rows, 768) f32.  tm=512 keeps the VMEM
    footprint ~11 MiB (safe on v5e's 16 MiB scoped default)."""
    assert f.shape == h.shape and h.shape[1] % 8 == 0
    try:
        return _fuse_call(f, h, wf, wh, b, tm, True)
    except Exception:
        # pipeline_mode / pl.Buffered(1) unsupported -> default double buffering.
        return _fuse_call(f, h, wf, wh, b, tm, False)


# ---------------------------------------------------------------------------
# Parameter init (deterministic, matches nn.Linear(768*2, 768) shapes).
# Keeps PyTorch-layout f32 weights for the reference, plus stacked
# pre-transposed bf16 halves used by the kernel (transposed/cast exactly once).
# ---------------------------------------------------------------------------
def init_fuse_params(key, n_layers):
    params = []
    bound = 1.0 / float(np.sqrt(2 * FEAT))
    for _ in range(n_layers):
        per_t = {}
        wfs, whs, bs = [], [], []
        for t in NTYPE_TO_FUSE:
            key, kw, kb = jax.random.split(key, 3)
            w = jax.random.uniform(kw, (FEAT, 2 * FEAT), jnp.float32, -bound, bound)
            b = jax.random.uniform(kb, (FEAT,), jnp.float32, -bound, bound)
            per_t[t] = {"w": w, "b": b}                      # PyTorch layout (ref)
            wfs.append(w[:, :FEAT].T.astype(jnp.bfloat16))   # multiplies features_to_fuse
            whs.append(w[:, FEAT:].T.astype(jnp.bfloat16))   # multiplies h
            bs.append(b.reshape(1, FEAT))
        params.append({
            "ref": per_t,
            "wf": jnp.stack(wfs),                            # (3, 768, 768) bf16
            "wh": jnp.stack(whs),                            # (3, 768, 768) bf16
            "b": jnp.stack(bs).astype(jnp.float32),          # (3, 1, 768) f32
        })
    return params


# ---------------------------------------------------------------------------
# Fuse.forward (random_features=True path)
# ---------------------------------------------------------------------------
def fuse_forward(node_feats, edges_event2center, params, rand_key):
    # 1) g.update_all(copy_u('x','m'), mean('m','x'), etype='event2center')
    src, dst = edges_event2center
    n_center = node_feats["center"].shape[0]
    center_x = event2center_mean(node_feats["event"], src, dst, n_center)
    node_feats = dict(node_feats, center=center_x)

    counts = [node_feats[t].shape[0] for t in NTYPE_TO_FUSE]
    n_rows = _round_up(max(counts), 8)
    g = len(NTYPE_TO_FUSE)

    # 2) random_features: h = {ntype: randn_like(x)} under no_grad, drawn as one
    #    stacked (3, n_rows, 768) array so the fuse stage is 1 pallas_call/layer.
    rand_key, k = jax.random.split(rand_key)
    h_fuse_stacked = jax.random.normal(k, (g, n_rows, FEAT), jnp.float32)

    # 3) stack the fused ntypes' features ONCE; they stay stacked across layers.
    h_stacked = jnp.zeros((g, n_rows, FEAT), jnp.float32)
    for i, t in enumerate(NTYPE_TO_FUSE):
        h_stacked = h_stacked.at[i, : counts[i]].set(node_feats[t])

    for layer_params in params:
        h_stacked = fuse_linear_stacked(
            h_fuse_stacked, h_stacked,
            layer_params["wf"], layer_params["wh"], layer_params["b"],
        )
        # TODO(synk): Heterogeneous_GNN layer (self.gnn[i]) implementation is not
        # provided in the reference; treated as identity between fuse stages.

    h = {"doc": node_feats["doc"]}
    h_fuse = {}
    for i, t in enumerate(NTYPE_TO_FUSE):
        h[t] = h_stacked[i, : counts[i]]
        h_fuse[t] = h_fuse_stacked[i, : counts[i]]
    return h, h_fuse, node_feats


# ---------------------------------------------------------------------------
def _reference(node_feats, edges_event2center, params, h_fuse):
    """Pure-JAX f32 reference for correctness check."""
    src, dst = edges_event2center
    n_center = node_feats["center"].shape[0]
    n_event = node_feats["event"].shape[0]
    a = jnp.zeros((n_center, n_event), jnp.float32).at[dst, src].add(1.0)
    a = a / jnp.maximum(a.sum(-1, keepdims=True), 1.0)
    h = dict(node_feats, center=a @ node_feats["event"])
    for layer_params in params:
        for t in NTYPE_TO_FUSE:
            w, b = layer_params["ref"][t]["w"], layer_params["ref"][t]["b"]
            x = jnp.concatenate([h_fuse[t], h[t]], axis=-1)
            h[t] = x @ w.T + b
    return h


if __name__ == "__main__":
    key = jax.random.PRNGKey(0)
    k_doc, k_ent, k_evt, k_params, k_rand = jax.random.split(key, 5)

    n_doc, n_ent, n_event, n_center = 2, 16, 16, 8
    n_layers = 2

    node_feats = {
        "doc": jax.random.normal(k_doc, (n_doc, FEAT), jnp.float32),
        "ent": jax.random.normal(k_ent, (n_ent, FEAT), jnp.float32),
        "event": jax.random.normal(k_evt, (n_event, FEAT), jnp.float32),
        # center features get overwritten by the event2center mean reduce
        "center": jnp.zeros((n_center, FEAT), jnp.float32),
    }

    # event2center edges: center 0 has in-degree 4, centers 1..6 have 2, center 7 has 0.
    src_list, dst_list = [0, 1, 2, 3], [0, 0, 0, 0]
    for c in range(1, 7):
        src_list += [2 * c, 2 * c + 1]
        dst_list += [c, c]
    src = jnp.array(src_list, jnp.int32)
    dst = jnp.array(dst_list, jnp.int32)

    params = init_fuse_params(k_params, n_layers)

    h, h_fuse, agg_feats = fuse_forward(node_feats, (src, dst), params, k_rand)
    jax.block_until_ready(h)

    # correctness check vs pure-JAX f32 reference (kernel matmuls use bf16
    # inputs with f32 accumulation -> looser tolerance)
    h_ref = _reference(node_feats, (src, dst), params, h_fuse)
    for t in ["doc"] + NTYPE_TO_FUSE:
        np.testing.assert_allclose(
            np.asarray(h[t]), np.asarray(h_ref[t]), rtol=3e-2, atol=3e-2
        )

    print("KERNEL_OK")
</pallas_src>

<mosaic_0001>
module attributes {stable_mosaic.version = 11 : i64} {
  func.func @_seg_mean_kernel(%arg0: i32, %arg1: memref<9xi32, #tpu.memory_space<smem>>, %arg2: memref<16xi32, #tpu.memory_space<smem>>, %arg3: memref<16xi32, #tpu.memory_space<smem>>, %arg4: memref<16x768xf32, #tpu.memory_space<any>>, %arg5: memref<8x768xf32, #tpu.memory_space<vmem>>, %arg6: memref<2x1x768xf32, #tpu.memory_space<vmem>>, %arg7: memref<2x!tpu.dma_semaphore, #tpu.memory_space<semaphore_mem>>, %arg8: memref<8x768xf32, #tpu.memory_space<vmem>>) attributes {dimension_semantics = [#tpu.dimension_semantics<parallel>], iteration_bounds = array<i64: 1>, scalar_prefetch = 3 : i64, scratch_operands = 3 : i64, tpu.core_type = #tpu.core_type<tc>, window_params = [{}, {transform_indices = @transform_1, window_bounds = array<i64: 8, 768>}]} {
    %c8_i32 = arith.constant 8 : i32
    %0 = arith.muli %arg0, %c8_i32 : i32
    %1 = arith.index_cast %0 : i32 to index
    %2 = memref.load %arg1[%1] : memref<9xi32, #tpu.memory_space<smem>>
    %c8_i32_0 = arith.constant 8 : i32
    %3 = arith.addi %0, %c8_i32_0 : i32
    %4 = arith.index_cast %3 : i32 to index
    %5 = memref.load %arg1[%4] : memref<9xi32, #tpu.memory_space<smem>>
    %6 = arith.subi %5, %2 : i32
    %c0_i32 = arith.constant 0 : i32
    %7 = arith.cmpi sgt, %6, %c0_i32 : i32
    %8 = arith.extui %7 : i1 to i32
    %c0_i32_1 = arith.constant 0 : i32
    %9 = arith.cmpi ne, %8, %c0_i32_1 : i32
    scf.if %9 {
      %c0_i32_14 = arith.constant 0 : i32
      %21 = arith.addi %2, %c0_i32_14 : i32
      %22 = arith.index_cast %21 : i32 to index
      %23 = memref.load %arg2[%22] : memref<16xi32, #tpu.memory_space<smem>>
      %c0_i32_15 = arith.constant 0 : i32
      %c0_i32_16 = arith.constant 0 : i32
      %c0_i32_17 = arith.constant 0 : i32
      %24 = tpu.memref_slice %arg4[%23, %c0_i32_17] : memref<16x768xf32, #tpu.memory_space<any>> -> memref<1x768xf32, #tpu.memory_space<any>>
      %c0_i32_18 = arith.constant 0 : i32
      %c0_i32_19 = arith.constant 0 : i32
      %25 = tpu.memref_slice %arg6[%c0_i32_15, %c0_i32_18, %c0_i32_19] : memref<2x1x768xf32, #tpu.memory_space<vmem>> -> memref<1x1x768xf32, #tpu.memory_space<vmem>>
      %26 = tpu.memref_squeeze %25 : memref<1x1x768xf32, #tpu.memory_space<vmem>> -> memref<1x768xf32, #tpu.memory_space<vmem>>
      %27 = tpu.memref_slice %arg7[%c0_i32_16] : memref<2x!tpu.dma_semaphore, #tpu.memory_space<semaphore_mem>> -> memref<1x!tpu.dma_semaphore, #tpu.memory_space<semaphore_mem>>
      %28 = tpu.memref_squeeze %27 : memref<1x!tpu.dma_semaphore, #tpu.memory_space<semaphore_mem>> -> memref<!tpu.dma_semaphore, #tpu.memory_space<semaphore_mem>>
      tpu.enqueue_dma source(%24 : memref<1x768xf32, #tpu.memory_space<any>>) target(%26 : memref<1x768xf32, #tpu.memory_space<vmem>>) target_semaphore(%28 : memref<!tpu.dma_semaphore, #tpu.memory_space<semaphore_mem>>)
    } else {
    }
    %cst = arith.constant 0.000000e+00 : f32
    %10 = vector.broadcast %cst : f32 to vector<8x768xf32>
    %c0 = arith.constant 0 : index
    %c0_2 = arith.constant 0 : index
    %11 = vector.load %arg8[%c0, %c0_2] : memref<8x768xf32, #tpu.memory_space<vmem>>, vector<8x768xf32>
    tpu.vector_store %arg8[%c0, %c0_2], %10 {strides = array<i32>} : memref<8x768xf32, #tpu.memory_space<vmem>>, vector<8x768xf32>,
    %12 = tpu.iota {dimensions = array<i32: 0>} : vector<8x1xi32>
    %c0_i32_3 = arith.constant 0 : i32
    %13 = arith.subi %6, %c0_i32_3 : i32
    %c1_i32 = arith.constant 1 : i32
    %c1_i32_4 = arith.constant 1 : i32
    %14 = arith.subi %c1_i32, %c1_i32_4 : i32
    %15 = arith.addi %13, %14 : i32
    %c1_i32_5 = arith.constant 1 : i32
    %16 = arith.divsi %15, %c1_i32_5 : i32
    %c1_i32_6 = arith.constant 1 : i32
    %c0_i32_7 = arith.constant 0 : i32
    %c0_i32_8 = arith.constant 0 : i32
    %17 = arith.subi %16, %c0_i32_8 : i32
    %18 = arith.addi %c0_i32_8, %17 : i32
    %c1_i32_9 = arith.constant 1 : i32
    scf.for %arg9 = %c0_i32_8 to %18 step %c1_i32_9  : i32 {
      %21 = arith.muli %arg9, %c1_i32_6 : i32
      %22 = arith.addi %c0_i32_7, %21 : i32
      %c1_i32_14 = arith.constant 1 : i32
      %23 = arith.andi %22, %c1_i32_14 : i32
      %24 = arith.addi %2, %22 : i32
      %25 = arith.index_cast %24 : i32 to index
      %26 = memref.load %arg3[%25] : memref<16xi32, #tpu.memory_space<smem>>
      %27 = arith.subi %26, %0 : i32
      %c1_i32_15 = arith.constant 1 : i32
      %28 = arith.addi %26, %c1_i32_15 : i32
      %29 = arith.index_cast %28 : i32 to index
      %30 = memref.load %arg1[%29] : memref<9xi32, #tpu.memory_space<smem>>
      %31 = arith.index_cast %26 : i32 to index
      %32 = memref.load %arg1[%31] : memref<9xi32, #tpu.memory_space<smem>>
      %33 = arith.subi %30, %32 : i32
      %34 = arith.sitofp %33 : i32 to f32
      %c1_i32_16 = arith.constant 1 : i32
      %35 = arith.addi %22, %c1_i32_16 : i32
      %36 = arith.cmpi slt, %35, %6 : i32
      %37 = arith.extui %36 : i1 to i32
      %c0_i32_17 = arith.constant 0 : i32
      %38 = arith.cmpi ne, %37, %c0_i32_17 : i32
      scf.if %38 {
        %c1_i32_30 = arith.constant 1 : i32
        %61 = arith.addi %22, %c1_i32_30 : i32
        %c1_i32_31 = arith.constant 1 : i32
        %62 = arith.subi %c1_i32_31, %23 : i32
        %63 = arith.addi %2, %61 : i32
        %64 = arith.index_cast %63 : i32 to index
        %65 = memref.load %arg2[%64] : memref<16xi32, #tpu.memory_space<smem>>
        %c0_i32_32 = arith.constant 0 : i32
        %66 = tpu.memref_slice %arg4[%65, %c0_i32_32] : memref<16x768xf32, #tpu.memory_space<any>> -> memref<1x768xf32, #tpu.memory_space<any>>
        %c0_i32_33 = arith.constant 0 : i32
        %c0_i32_34 = arith.constant 0 : i32
        %67 = tpu.memref_slice %arg6[%62, %c0_i32_33, %c0_i32_34] : memref<2x1x768xf32, #tpu.memory_space<vmem>> -> memref<1x1x768xf32, #tpu.memory_space<vmem>>
        %68 = tpu.memref_squeeze %67 : memref<1x1x768xf32, #tpu.memory_space<vmem>> -> memref<1x768xf32, #tpu.memory_space<vmem>>
        %69 = tpu.memref_slice %arg7[%62] : memref<2x!tpu.dma_semaphore, #tpu.memory_space<semaphore_mem>> -> memref<1x!tpu.dma_semaphore, #tpu.memory_space<semaphore_mem>>
        %70 = tpu.memref_squeeze %69 : memref<1x!tpu.dma_semaphore, #tpu.memory_space<semaphore_mem>> -> memref<!tpu.dma_semaphore, #tpu.memory_space<semaphore_mem>>
        tpu.enqueue_dma source(%66 : memref<1x768xf32, #tpu.memory_space<any>>) target(%68 : memref<1x768xf32, #tpu.memory_space<vmem>>) target_semaphore(%70 : memref<!tpu.dma_semaphore, #tpu.memory_space<semaphore_mem>>)
      } else {
      }
      %c0_i32_18 = arith.constant 0 : i32
      %c0_i32_19 = arith.constant 0 : i32
      %39 = tpu.memref_slice %arg4[%c0_i32_18, %c0_i32_19] : memref<16x768xf32, #tpu.memory_space<any>> -> memref<1x768xf32, #tpu.memory_space<any>>
      %c0_i32_20 = arith.constant 0 : i32
      %c0_i32_21 = arith.constant 0 : i32
      %40 = tpu.memref_slice %arg6[%23, %c0_i32_20, %c0_i32_21] : memref<2x1x768xf32, #tpu.memory_space<vmem>> -> memref<1x1x768xf32, #tpu.memory_space<vmem>>
      %41 = tpu.memref_squeeze %40 : memref<1x1x768xf32, #tpu.memory_space<vmem>> -> memref<1x768xf32, #tpu.memory_space<vmem>>
      %42 = tpu.memref_slice %arg7[%23] : memref<2x!tpu.dma_semaphore, #tpu.memory_space<semaphore_mem>> -> memref<1x!tpu.dma_semaphore, #tpu.memory_space<semaphore_mem>>
      %43 = tpu.memref_squeeze %42 : memref<1x!tpu.dma_semaphore, #tpu.memory_space<semaphore_mem>> -> memref<!tpu.dma_semaphore, #tpu.memory_space<semaphore_mem>>
      tpu.wait_dma2 semaphore(%43 : memref<!tpu.dma_semaphore, #tpu.memory_space<semaphore_mem>>) src(%39 : memref<1x768xf32, #tpu.memory_space<any>>) dst(%41 : memref<1x768xf32, #tpu.memory_space<vmem>>)
      %44 = arith.index_cast %23 : i32 to index
      %c0_22 = arith.constant 0 : index
      %c0_23 = arith.constant 0 : index
      %45 = vector.load %arg6[%44, %c0_22, %c0_23] : memref<2x1x768xf32, #tpu.memory_space<vmem>>, vector<1x1x768xf32>
      %46 = vector.shape_cast %45 : vector<1x1x768xf32> to vector<1x768xf32>
      %cst_24 = arith.constant 1.000000e+00 : f32
      %47 = arith.divf %cst_24, %34 : f32
      %48 = vector.broadcast %47 : f32 to vector<1x768xf32>
      %49 = arith.mulf %46, %48 : vector<1x768xf32>
      %c0_25 = arith.constant 0 : index
      %c0_26 = arith.constant 0 : index
      %50 = vector.load %arg8[%c0_25, %c0_26] : memref<8x768xf32, #tpu.memory_space<vmem>>, vector<8x768xf32>
      %51 = vector.broadcast %27 : i32 to vector<8x1xi32>
      %52 = arith.cmpi eq, %12, %51 : vector<8x1xi32>
      %cst_27 = arith.constant 0.000000e+00 : f32
      %53 = vector.shape_cast %52 : vector<8x1xi1> to vector<8x1xi1>
      %54 = vector.broadcast %53 : vector<8x1xi1> to vector<8x768xi1>
      %55 = vector.shape_cast %49 : vector<1x768xf32> to vector<1x768xf32>
      %56 = vector.broadcast %55 : vector<1x768xf32> to vector<8x768xf32>
      %57 = vector.broadcast %cst_27 : f32 to vector<8x768xf32>
      %58 = arith.select %54, %56, %57 : vector<8x768xi1>, vector<8x768xf32>
      %59 = arith.addf %50, %58 : vector<8x768xf32>
      %c0_28 = arith.constant 0 : index
      %c0_29 = arith.constant 0 : index
      %60 = vector.load %arg8[%c0_28, %c0_29] : memref<8x768xf32, #tpu.memory_space<vmem>>, vector<8x768xf32>
      tpu.vector_store %arg8[%c0_28, %c0_29], %59 {strides = array<i32>} : memref<8x768xf32, #tpu.memory_space<vmem>>, vector<8x768xf32>,
    }
    %c0_10 = arith.constant 0 : index
    %c0_11 = arith.constant 0 : index
    %19 = vector.load %arg8[%c0_10, %c0_11] : memref<8x768xf32, #tpu.memory_space<vmem>>, vector<8x768xf32>
    %c0_12 = arith.constant 0 : index
    %c0_13 = arith.constant 0 : index
    %20 = vector.load %arg5[%c0_12, %c0_13] : memref<8x768xf32, #tpu.memory_space<vmem>>, vector<8x768xf32>
    tpu.vector_store %arg5[%c0_12, %c0_13], %19 {strides = array<i32>} : memref<8x768xf32, #tpu.memory_space<vmem>>, vector<8x768xf32>,
    return
  }
  func.func @transform_1(%arg0: i32, %arg1: memref<9xi32, #tpu.memory_space<smem>>, %arg2: memref<16xi32, #tpu.memory_space<smem>>, %arg3: memref<16xi32, #tpu.memory_space<smem>>) -> (i32, i32) {
    %c0_i32 = arith.constant 0 : i32
    %c0_i32_0 = arith.constant 0 : i32
    return %arg0, %c0_i32 : i32, i32
  }
}

</mosaic_0001>

<llo_original>
// kernel: tpu_custom_call.1
$region0: #{tpu_custom_call.1}
  #allocation0 [shape = 'u32[]', space=smem, size = 0x4, offset = 0x4, fixed_abs, tag = 'smem constant byte address 0x4 - core index']
  #allocation1 [shape = 'u32[144,128]{1,0:T(1,128)}', space=vmem, size = 0x12000, scoped, tag = 'internal scratch']
  #allocation2 [shape = 'f32[2,1,768]{2,1,0:T(1,128)}', space=vmem, size = 0x1800, scoped, tag = 'scratch operand']
  #allocation3 [shape = 's32[2]{0}', space=sflag, size = 0x8, scoped, tag = 'scratch operand']
  #allocation4 [shape = 'f32[8,768]{1,0:T(8,128)}', space=vmem, size = 0x6000, scoped, tag = 'scratch operand']
  #allocation5 [shape = 's32[1]{0}', space=sflag, size = 0x4, scoped, tag = 'scoped memory for tpu_custom_call.1']
  #allocation6 [shape = 'u8[512]{0}', space=smem, size = 0x200, scoped, tag = 'prefetched SMEM operand 0']
  #allocation7 [shape = 'u8[512]{0}', space=smem, size = 0x200, scoped, tag = 'prefetched SMEM operand 1']
  #allocation8 [shape = 'u8[512]{0}', space=smem, size = 0x200, scoped, tag = 'prefetched SMEM operand 2']
  #allocation11 [shape = 's32[]', space=sflag, size = 0x4, offset = 0, fixed_abs, tag = 'sflag constant byte address 0x0 - dummy sync flag']
  #allocation12 [shape = 's32[]', space=sflag, size = 0x4, offset = 0, fixed_abs, tag = 'sflag constant byte address 0x0 - dummy sync flag']
  %s0 = inlined_call_operand.hbm [shape: s32[9], index: 0, kind: input, shape index: {}]
  %s1 = inlined_call_operand.vmem [shape: s32[16], index: 1, kind: input, shape index: {}]
  %s2 = inlined_call_operand.vmem [shape: s32[16], index: 2, kind: input, shape index: {}]
  %s3 = inlined_call_operand.hbm [shape: f32[16,768], index: 3, kind: input, shape index: {}]
  %s4 = inlined_call_operand.hbm [shape: f32[8,768], index: 4, kind: output, shape index: {}]
  %s5 = sld [smem:[#allocation0]]
  $region25: #{tpu_custom_call.1} parent=0
    _
  %s7 = ssub.s32 1, %s5
  %s8 = scalar_select 0, %s7, %s5
  %10 = dma.hbm_to_smem %s0, 16, [#allocation6], [#allocation5]
  %s11 = sshll.u32 %s1, 4
  %s12 = int_to_ptr.vmem [resolvable:$true] %s11
  %14 = dma.vmem_to_smem %s12, 16, [#allocation7], [#allocation5]
  %s15 = sshll.u32 %s2, 4
  %s16 = int_to_ptr.vmem [resolvable:$true] %s15
  %18 = dma.vmem_to_smem %s16, 16, [#allocation8], [#allocation5]
  %19 = dma.done [#allocation5], 48
  %20 = sfence
  $region1: #{tpu_custom_call.1} parent=0
    #allocation9 [shape = 'u8[24576]{0}', space=vmem, size = 0x6000, scoped, tag = 'output window, operand 0, single buffered']
    #allocation10 [shape = 's32[1]{0}', space=sflag, size = 0x4, scoped, tag = 'scoped memory for tpu_custom_call.1']
    %21 = vsyncpa [#allocation10], 0
    %s22 = smul.u32 0, 8
    %s23 = sld [smem:[#allocation6 + %s22]]
    %s24 = sadd.s32 %s22, 8
    %s25 = sld [smem:[#allocation6 + %s24]]
    %s26 = ssub.s32 %s25, %s23
    %p27 = scmp.gt.s32.totalorder %s26, 0
    // Predicated region
    $region2: #{tpu_custom_call.1} parent=1 // pred_check
      %p28 = pneg %p27
    $region3: #{tpu_custom_call.1} parent=1 // pred_check_branch
      %30 = sbr.rel (%p28) target = $region5
    $region4: #{tpu_custom_call.1} parent=1 // pred_region
      %s31 = sld [smem:[#allocation7 + %s23]]
      %s32 = sshrl.u32 %s31, 3
      %s33 = sand.u32 %s31, 7
      %s34 = smul.u32 %s32, 48
      %s35 = sadd.s32 %s33, %s34
      %s36 = smul.addr %s35, 16
      %s37 = scalar_lea.hbm %s3, %s36
      %s39 = sshll.u32 [#allocation2], 4
      %s40 = int_to_ptr.vmem [resolvable:$true] %s39
      %42 = dma.hbm_to_vmem [thread:$0]  %s37, 96, %s40, [#allocation3], 128, 16, 1
    $region5: #{tpu_custom_call.1} parent=1 // pred_fallthru
      _
    %43 = vst [vmem:[#allocation4] sm:$0xff] 0.0
    %44 = vst [vmem:[#allocation4 + $0x8] sm:$0xff] 0.0
    %45 = vst [vmem:[#allocation4 + $0x10] sm:$0xff] 0.0
    %46 = vst [vmem:[#allocation4 + $0x18] sm:$0xff] 0.0
    %47 = vst [vmem:[#allocation4 + $0x20] sm:$0xff] 0.0
    %48 = vst [vmem:[#allocation4 + $0x28] sm:$0xff] 0.0
    %v49 = vlaneseq
    %v50 = vshrl.u32 %v49, 7
    // While loop
    $region6: #{tpu_custom_call.1} parent=1 // loop_pre_header
      _
    $region7: #{tpu_custom_call.1} parent=1 // loop_header
      %s52 = sphi 0, %s54
      %p53 = scmp.ge.s32.totalorder %s52, %s26
    $region8: #{tpu_custom_call.1} parent=1 // loop_header_branch
      %56 = sbr.rel (%p53) target = $region12
    $region9: #{tpu_custom_call.1} parent=1 // loop_body
      %s57 = sand.u32 %s52, 1
      %s58 = sadd.s32 %s23, %s52
      %s59 = sld [smem:[#allocation8 + %s58]]
      %s60 = ssub.s32 %s59, %s22
      %s61 = sadd.s32 %s59, 1
      %s62 = sld [smem:[#allocation6 + %s61]]
      %s63 = sld [smem:[#allocation6 + %s59]]
      %s64 = ssub.s32 %s62, %s63
      %s65 = scvt.s32.f32 %s64
      %s66 = sadd.s32 %s52, 1
      %p67 = scmp.lt.s32.totalorder %s66, %s26
      // Predicated region
      $region13: #{tpu_custom_call.1} parent=9 // pred_check
        %p68 = pneg %p67
      $region14: #{tpu_custom_call.1} parent=9 // pred_check_branch
        %70 = sbr.rel (%p68) target = $region16
      $region15: #{tpu_custom_call.1} parent=9 // pred_region
        %s71 = ssub.s32 1, %s57
        %s72 = sadd.s32 %s23, %s66
        %s73 = sld [smem:[#allocation7 + %s72]]
        %s74 = sshrl.u32 %s73, 3
        %s75 = sand.u32 %s73, 7
        %s76 = smul.u32 %s74, 48
        %s77 = sadd.s32 %s75, %s76
        %s78 = smul.addr %s77, 16
        %s79 = scalar_lea.hbm %s3, %s78
        %s80 = smul.u32 %s71, 6
        %s81 = scalar_lea.vmem [#allocation2], %s80
        %s82 = scalar_lea.sflag [#allocation3], %s71
        %s84 = sshll.u32 %s81, 4
        %s85 = int_to_ptr.vmem [resolvable:$true] %s84
        %87 = dma.hbm_to_vmem [thread:$0]  %s79, 96, %s85, %s82, 128, 16, 1
      $region16: #{tpu_custom_call.1} parent=9 // pred_fallthru
        _
      %s88 = smul.u32 %s57, 6
      %s89 = scalar_lea.vmem [#allocation2], %s88
      %s90 = scalar_lea.sflag [#allocation3], %s57
      %s91 = smul.u32 1, 6
      %s92 = sshll.u32 %s91, 4
      %93 = dma.done %s90, %s92
      %v94 = vld [vmem:[%s89] sm:$0x3f]
      %v95 = vstv %s65
      %v96 = vrcp.pop %v95
      %s97 = vtos %v96
      %v98 = vstv %s97
      %v99 = vmul.f32 %v94, %v98
      %v100 = vld [vmem:[#allocation4] sm:$0xff]
      %v101 = vld [vmem:[#allocation4 + $0x8] sm:$0xff]
      %v102 = vld [vmem:[#allocation4 + $0x10] sm:$0xff]
      %v103 = vld [vmem:[#allocation4 + $0x18] sm:$0xff]
      %v104 = vld [vmem:[#allocation4 + $0x20] sm:$0xff]
      %v105 = vld [vmem:[#allocation4 + $0x28] sm:$0xff]
      %v106 = vstv %s60
      %vm107 = vcmp.eq.s32.totalorder %v50, %v106
      %v108 = vsel %vm107, 1, 0
      %vm109 = vcmp.eq.s32.totalorder %v108, 1
      %v111 = vlaneseq
      %v112 = vshrl.u32 %v111, 7
      %v113 = vsub.s32 0, %v112
      %v114 = vrot.slane %v99, %v113
      %v115 = vlaneseq
      %v116 = vshrl.u32 %v115, 7
      %v117 = vsub.s32 1, %v116
      %v118 = vrot.slane %v99, %v117
      %v119 = vlaneseq
      %v120 = vshrl.u32 %v119, 7
      %v121 = vsub.s32 2, %v120
      %v122 = vrot.slane %v99, %v121
      %v123 = vlaneseq
      %v124 = vshrl.u32 %v123, 7
      %v125 = vsub.s32 3, %v124
      %v126 = vrot.slane %v99, %v125
      %v127 = vlaneseq
      %v128 = vshrl.u32 %v127, 7
      %v129 = vsub.s32 4, %v128
      %v130 = vrot.slane %v99, %v129
      %v131 = vlaneseq
      %v132 = vshrl.u32 %v131, 7
      %v133 = vsub.s32 5, %v132
      %v134 = vrot.slane %v99, %v133
      %v141 = vsel %vm109, %v114, 0.0
      %v142 = vsel %vm109, %v118, 0.0
      %v143 = vsel %vm109, %v122, 0.0
      %v144 = vsel %vm109, %v126, 0.0
      %v145 = vsel %vm109, %v130, 0.0
      %v146 = vsel %vm109, %v134, 0.0
      %v147 = vadd.f32 %v100, %v141
      %v148 = vadd.f32 %v101, %v142
      %v149 = vadd.f32 %v102, %v143
      %v150 = vadd.f32 %v103, %v144
      %v151 = vadd.f32 %v104, %v145
      %v152 = vadd.f32 %v105, %v146
      %153 = vst [vmem:[#allocation4] sm:$0xff] %v147
      %154 = vst [vmem:[#allocation4 + $0x8] sm:$0xff] %v148
      %155 = vst [vmem:[#allocation4 + $0x10] sm:$0xff] %v149
      %156 = vst [vmem:[#allocation4 + $0x18] sm:$0xff] %v150
      %157 = vst [vmem:[#allocation4 + $0x20] sm:$0xff] %v151
      %158 = vst [vmem:[#allocation4 + $0x28] sm:$0xff] %v152
    $region10: #{tpu_custom_call.1} parent=1 // loop_footer
      %s54 = sadd.s32 %s52, 1
    $region11: #{tpu_custom_call.1} parent=1 // loop_footer_branch
      %51 = sbr.rel target = $region7
    $region12: #{tpu_custom_call.1} parent=1 // loop_exit
      _
    %v159 = vld [vmem:[#allocation4] sm:$0xff]
    %v160 = vld [vmem:[#allocation4 + $0x8] sm:$0xff]
    %v161 = vld [vmem:[#allocation4 + $0x10] sm:$0xff]
    %v162 = vld [vmem:[#allocation4 + $0x18] sm:$0xff]
    %v163 = vld [vmem:[#allocation4 + $0x20] sm:$0xff]
    %v164 = vld [vmem:[#allocation4 + $0x28] sm:$0xff]
    %165 = vst [vmem:[#allocation9] sm:$0xff] %v159
    %166 = vst [vmem:[#allocation9 + $0x8] sm:$0xff] %v160
    %167 = vst [vmem:[#allocation9 + $0x10] sm:$0xff] %v161
    %168 = vst [vmem:[#allocation9 + $0x18] sm:$0xff] %v162
    %169 = vst [vmem:[#allocation9 + $0x20] sm:$0xff] %v163
    %170 = vst [vmem:[#allocation9 + $0x28] sm:$0xff] %v164
    // Predicated region
    $region17: #{tpu_custom_call.1} parent=1 // pred_check
      _
    $region18: #{tpu_custom_call.1} parent=1 // pred_check_branch
      %172 = sbr.rel (0) target = $region20
    $region19: #{tpu_custom_call.1} parent=1 // pred_region
      %s174 = ssub.s32 768, 768
      %175 = vsyncadd [#allocation10], %s174
      %s177 = sshll.u32 [#allocation9], 4
      %s178 = int_to_ptr.vmem [resolvable:$true] %s177
      %180 = dma.vmem_to_hbm [thread:$0]  %s178, 768, %s4, [#allocation10]
    $region20: #{tpu_custom_call.1} parent=1 // pred_fallthru
      _
    // Predicated region
    $region21: #{tpu_custom_call.1} parent=1 // pred_check
      _
    $region22: #{tpu_custom_call.1} parent=1 // pred_check_branch
      %182 = sbr.rel (0) target = $region24
    $region23: #{tpu_custom_call.1} parent=1 // pred_region
      %183 = dma.done [#allocation10], 768
    $region24: #{tpu_custom_call.1} parent=1 // pred_fallthru
      _
    %184 = vsyncpa [#allocation10], 1
  %185 = vsyncmov [#allocation3]
  %s186 = vpop.sfrf %185
  %p187 = scmp.eq.s32.totalorder %s186, 0
  %p188 = pneg %p187
  %190 = shalt.err (%p188)
  %s191 = scalar_lea.sflag [#allocation3], 1
  %192 = vsyncmov %s191
  %s193 = vpop.sfrf %192
  %p194 = scmp.eq.s32.totalorder %s193, 0
  %p195 = pneg %p194
  %197 = shalt.err (%p195)

</llo_original>
